<compile_context>
chip_gen: v7x
topology: tpu7x:2x2x1
jax: 0.10.0
libtpu: 0.0.40
codegen_flags: <defaults>
</compile_context>

<pallas_src>
import math

import jax
import jax.numpy as jnp
import numpy as np
from jax.experimental import pallas as pl
from jax.experimental.pallas import tpu as pltpu


def _gumbel_phi_kernel(inv_theta_ref, t_ref, o_ref):
    # inv_theta lives in SMEM as a (1, 1) scalar.
    inv_theta = inv_theta_ref[0, 0]
    t = t_ref[...].astype(jnp.float32)
    # t ** (1/theta) == exp((1/theta) * log(t))   (t > 0, copula domain)
    pow_t = jnp.exp(inv_theta * jnp.log(t))
    o_ref[...] = jnp.exp(-pow_t).astype(o_ref.dtype)


def _gumbel_phi_2d(slab, inv_theta_smem, *,
                   target_block_bytes=2 * 1024 * 1024,
                   vmem_limit_bytes=32 * 1024 * 1024):
    """Run the kernel over a lane-dense 2-D slab (C % 128 == 0), no padding."""
    R, C = slab.shape
    dtype = slab.dtype
    itemsize = jnp.dtype(dtype).itemsize

    # Row tile: ~2 MiB per block, sublane-aligned.  Never round a small input up
    # to a huge tile, and let Pallas mask the ragged last block instead of padding.
    br_target = max(8, (target_block_bytes // (itemsize * C)) // 8 * 8)
    if R % 8 == 0:
        br = min(br_target, R)                    # exact tiling (possibly ragged tail)
    elif R < 8:
        br = R                                    # single block == full array dim
    else:
        br = min(br_target, 8 * pl.cdiv(R, 8))    # ragged last block, masked by Pallas
    grid = (pl.cdiv(R, br),)

    cost = pl.CostEstimate(
        flops=2 * R * C,                    # mul + neg per element
        transcendentals=3 * R * C,          # log, exp, exp per element
        bytes_accessed=2 * R * C * itemsize,  # read t + write out (no padding streamed)
    )

    return pl.pallas_call(
        _gumbel_phi_kernel,
        out_shape=jax.ShapeDtypeStruct((R, C), dtype),
        grid=grid,
        in_specs=[
            # scalar parameter, same (1,1) SMEM block every grid step
            pl.BlockSpec((1, 1), lambda i: (0, 0),
                         memory_space=pltpu.MemorySpace.SMEM),
            # lane-dense row tile of the slab
            pl.BlockSpec((br, C), lambda i: (i, 0)),
        ],
        out_specs=pl.BlockSpec((br, C), lambda i: (i, 0)),
        compiler_params=pltpu.CompilerParams(
            dimension_semantics=("parallel",),   # shards rows across v7x's 2 TCs
            vmem_limit_bytes=vmem_limit_bytes,   # safe on v5e (16 MiB default) .. v7x
        ),
        cost_estimate=cost,
    )(inv_theta_smem, slab)


def gumbel_phi(t, theta):
    """Pallas implementation of GumbelPhi.forward: exp(-t ** (1/theta)).

    t:     any-shaped float array, strictly positive (copula domain)
    theta: python float / 0-d array / traced scalar (the nn.Parameter)
    """
    orig_shape = t.shape
    dtype = t.dtype
    total = math.prod(orig_shape)

    inv_theta = 1.0 / jnp.asarray(theta, dtype=jnp.float32)   # 0-d f32 scalar
    inv_theta_smem = inv_theta.reshape(1, 1)

    if total == 0:
        return jnp.zeros(orig_shape, dtype)

    # --- Path A (fast path): trailing dim already lane-aligned -> free collapse ---
    if len(orig_shape) >= 2 and orig_shape[-1] % 128 == 0:
        slab = t.reshape(-1, orig_shape[-1])
        return _gumbel_phi_2d(slab, inv_theta_smem).reshape(orig_shape)

    # --- Path B: total element count lane-aligned -> free flat repack, no copy ---
    if total % 128 == 0:
        if total % 1024 == 0:
            lane = 1024
        elif total % 512 == 0:
            lane = 512
        elif total % 256 == 0:
            lane = 256
        else:
            lane = 128
        slab = t.reshape(total // lane, lane)
        return _gumbel_phi_2d(slab, inv_theta_smem).reshape(orig_shape)

    # --- Path C: ragged total.  Kernel on the 128-aligned head, plain jnp on the
    #     (<128 element) tail.  No full-array pad/concat, no output slice. ---
    flat = t.reshape(-1)
    main = (total // 128) * 128

    def _jnp_ref(x):
        xf = x.astype(jnp.float32)
        return jnp.exp(-jnp.exp(inv_theta * jnp.log(xf))).astype(dtype)

    tail_out = _jnp_ref(flat[main:])
    if main == 0:
        return tail_out.reshape(orig_shape)
    head_out = _gumbel_phi_2d(flat[:main].reshape(main // 128, 128),
                              inv_theta_smem).reshape(-1)
    return jnp.concatenate([head_out, tail_out]).reshape(orig_shape)


if __name__ == "__main__":
    key = jax.random.PRNGKey(0)
    theta = 2.5  # would be nn.Parameter(torch.tensor(2.5)) in the reference module

    k0, k1, k2, k3 = jax.random.split(key, 4)

    # Native module-style input: t = E / M, strictly positive, shape (n, ndims).
    n, ndims = 16, 128
    t = jax.random.uniform(k0, (n, ndims), dtype=jnp.float32,
                           minval=0.1, maxval=3.0)
    out = jax.block_until_ready(gumbel_phi(t, theta))
    ref = jnp.exp(-(t ** (1.0 / theta)))
    np.testing.assert_allclose(np.asarray(out), np.asarray(ref),
                               rtol=1e-5, atol=1e-6)

    # Ragged row count: exercises cdiv grid + masked last row-block (Path A).
    t2 = jax.random.uniform(k1, (7, 256), dtype=jnp.float32,
                            minval=0.1, maxval=3.0)
    out2 = jax.block_until_ready(gumbel_phi(t2, theta))
    ref2 = jnp.exp(-(t2 ** (1.0 / theta)))
    np.testing.assert_allclose(np.asarray(out2), np.asarray(ref2),
                               rtol=1e-5, atol=1e-6)

    # Ragged total: 128-aligned head through the kernel + jnp tail (Path C).
    t3 = jax.random.uniform(k2, (7, 37), dtype=jnp.float32,
                            minval=0.1, maxval=3.0)
    out3 = jax.block_until_ready(gumbel_phi(t3, theta))
    ref3 = jnp.exp(-(t3 ** (1.0 / theta)))
    np.testing.assert_allclose(np.asarray(out3), np.asarray(ref3),
                               rtol=1e-5, atol=1e-6)

    # bf16 input: exercises the explicit astype-on-store path.
    t4 = jax.random.uniform(k3, (8, 128), dtype=jnp.bfloat16,
                            minval=0.1, maxval=3.0)
    out4 = jax.block_until_ready(gumbel_phi(t4, theta))
    ref4 = jnp.exp(-(t4.astype(jnp.float32) ** (1.0 / theta))).astype(jnp.bfloat16)
    np.testing.assert_allclose(np.asarray(out4, dtype=np.float32),
                               np.asarray(ref4, dtype=np.float32),
                               rtol=2e-2, atol=2e-2)

    print("KERNEL_OK")
</pallas_src>

<mosaic_0001>
module attributes {stable_mosaic.version = 11 : i64} {
  func.func @_gumbel_phi_kernel(%arg0: i32, %arg1: memref<1x1xf32, #tpu.memory_space<smem>>, %arg2: memref<16x128xf32, #tpu.memory_space<vmem>>, %arg3: memref<16x128xf32, #tpu.memory_space<vmem>>) attributes {dimension_semantics = [#tpu.dimension_semantics<parallel>], iteration_bounds = array<i64: 1>, scalar_prefetch = 0 : i64, scratch_operands = 0 : i64, tpu.core_type = #tpu.core_type<tc>, window_params = [{transform_indices = @transform_0, window_bounds = array<i64: 1, 1>}, {transform_indices = @transform_1, window_bounds = array<i64: 16, 128>}, {transform_indices = @transform_2, window_bounds = array<i64: 16, 128>}]} {
    %c0 = arith.constant 0 : index
    %c0_0 = arith.constant 0 : index
    %0 = memref.load %arg1[%c0, %c0_0] : memref<1x1xf32, #tpu.memory_space<smem>>
    %c0_1 = arith.constant 0 : index
    %c0_2 = arith.constant 0 : index
    %1 = vector.load %arg2[%c0_1, %c0_2] : memref<16x128xf32, #tpu.memory_space<vmem>>, vector<16x128xf32>
    %2 = math.log %1 : vector<16x128xf32>
    %3 = vector.broadcast %0 : f32 to vector<16x128xf32>
    %4 = arith.mulf %3, %2 : vector<16x128xf32>
    %5 = math.exp %4 : vector<16x128xf32>
    %cst = arith.constant 0.000000e+00 : f32
    %6 = vector.broadcast %cst : f32 to vector<16x128xf32>
    %7 = arith.subf %6, %5 : vector<16x128xf32>
    %8 = math.exp %7 : vector<16x128xf32>
    %c0_3 = arith.constant 0 : index
    %c0_4 = arith.constant 0 : index
    %9 = vector.load %arg3[%c0_3, %c0_4] : memref<16x128xf32, #tpu.memory_space<vmem>>, vector<16x128xf32>
    tpu.vector_store %arg3[%c0_3, %c0_4], %8 {strides = array<i32>} : memref<16x128xf32, #tpu.memory_space<vmem>>, vector<16x128xf32>,
    return
  }
  func.func @transform_0(%arg0: i32) -> (i32, i32) {
    %c0_i32 = arith.constant 0 : i32
    %c0_i32_0 = arith.constant 0 : i32
    %c0_i32_1 = arith.constant 0 : i32
    return %c0_i32, %c0_i32_0 : i32, i32
  }
  func.func @transform_1(%arg0: i32) -> (i32, i32) {
    %c0_i32 = arith.constant 0 : i32
    %c0_i32_0 = arith.constant 0 : i32
    return %arg0, %c0_i32 : i32, i32
  }
  func.func @transform_2(%arg0: i32) -> (i32, i32) {
    %c0_i32 = arith.constant 0 : i32
    %c0_i32_0 = arith.constant 0 : i32
    return %arg0, %c0_i32 : i32, i32
  }
}

</mosaic_0001>

<llo_original>
// kernel: tpu_custom_call.1
$region0: #{tpu_custom_call.1}
  #allocation0 [shape = 'u32[]', space=smem, size = 0x4, offset = 0x4, fixed_abs, tag = 'smem constant byte address 0x4 - core index']
  #allocation1 [shape = 'u32[144,128]{1,0:T(1,128)}', space=vmem, size = 0x12000, scoped, tag = 'internal scratch']
  #allocation2 [shape = 'f32[1,1]{1,0:T(1,128)S(6)}', space=smem, size = 0x200, scoped, tag = 'scoped memory for tpu_custom_call.1']
  %s0 = inlined_call_operand.<no memory space> [shape: f32[1,1], index: 0, kind: input, shape index: {}]
  %s1 = inlined_call_operand.hbm [shape: f32[16,128], index: 1, kind: input, shape index: {}]
  %s2 = inlined_call_operand.hbm [shape: f32[16,128], index: 2, kind: output, shape index: {}]
  %s3 = sld [smem:[#allocation0]]
  $region22: #{tpu_custom_call.1} parent=0
    _
  %s5 = ssub.s32 1, %s3
  %s6 = scalar_select 0, %s5, %s3
  %7 = sst [smem:[#allocation2]] %s0
  $region1: #{tpu_custom_call.1} parent=0
    #allocation3 [shape = 'u8[8192]{0}', space=vmem, size = 0x2000, scoped, tag = 'input window, operand 1, single buffered']
    #allocation4 [shape = 's32[1]{0}', space=sflag, size = 0x4, scoped, tag = 'scoped memory for tpu_custom_call.1']
    #allocation5 [shape = 's32[1]{0}', space=sflag, size = 0x4, scoped, tag = 'scoped memory for tpu_custom_call.1']
    #allocation6 [shape = 'u8[8192]{0}', space=vmem, size = 0x2000, scoped, tag = 'output window, operand 0, single buffered']
    %8 = vsyncpa [#allocation4], 0
    %9 = vsyncpa [#allocation5], 0
    // Predicated region
    $region2: #{tpu_custom_call.1} parent=1 // pred_check
      _
    $region3: #{tpu_custom_call.1} parent=1 // pred_check_branch
      %11 = sbr.rel (0) target = $region5
    $region4: #{tpu_custom_call.1} parent=1 // pred_region
      _
    $region5: #{tpu_custom_call.1} parent=1 // pred_fallthru
      _
    // Predicated region
    $region6: #{tpu_custom_call.1} parent=1 // pred_check
      _
    $region7: #{tpu_custom_call.1} parent=1 // pred_check_branch
      %13 = sbr.rel (0) target = $region9
    $region8: #{tpu_custom_call.1} parent=1 // pred_region
      %s15 = ssub.s32 256, 256
      %16 = vsyncadd [#allocation4], %s15
      %s17 = sshll.u32 [#allocation3], 4
      %s18 = int_to_ptr.vmem [resolvable:$true] %s17
      %23 = dma.hbm_to_vmem [thread:$0]  %s1, 256, %s18, [#allocation4], 128, 128, 8
    $region9: #{tpu_custom_call.1} parent=1 // pred_fallthru
      _
    // Predicated region
    $region10: #{tpu_custom_call.1} parent=1 // pred_check
      _
    $region11: #{tpu_custom_call.1} parent=1 // pred_check_branch
      %25 = sbr.rel (0) target = $region13
    $region12: #{tpu_custom_call.1} parent=1 // pred_region
      %26 = dma.done [#allocation4], 256
    $region13: #{tpu_custom_call.1} parent=1 // pred_fallthru
      _
    %s27 = sld [smem:[#allocation2]]
    %v28 = vld [vmem:[#allocation3] sm:$0xff]
    %v29 = vld [vmem:[#allocation3 + $0x8] sm:$0xff]
    %v30 = vlog2.pop %v28
    %v31 = vmul.f32 %v30, 0.6931472
    %v32 = vlog2.pop %v29
    %v33 = vmul.f32 %v32, 0.6931472
    %v34 = vstv %s27
    %v35 = vmul.f32 %v34, %v31
    %v36 = vmul.f32 %v34, %v33
    %v37 = vmul.f32 %v35, 1.442695
    %v38 = vpow.pop %v37
    %v39 = vmul.f32 %v36, 1.442695
    %v40 = vpow.pop %v39
    %v41 = vsub.f32 0.0, %v38
    %v42 = vsub.f32 0.0, %v40
    %v43 = vmul.f32 %v41, 1.442695
    %v44 = vpow.pop %v43
    %v45 = vmul.f32 %v42, 1.442695
    %v46 = vpow.pop %v45
    %47 = vst [vmem:[#allocation6] sm:$0xff] %v44
    %48 = vst [vmem:[#allocation6 + $0x8] sm:$0xff] %v46
    // Predicated region
    $region14: #{tpu_custom_call.1} parent=1 // pred_check
      _
    $region15: #{tpu_custom_call.1} parent=1 // pred_check_branch
      %50 = sbr.rel (0) target = $region17
    $region16: #{tpu_custom_call.1} parent=1 // pred_region
      %s52 = ssub.s32 256, 256
      %53 = vsyncadd [#allocation5], %s52
      %s54 = sshll.u32 [#allocation6], 4
      %s55 = int_to_ptr.vmem [resolvable:$true] %s54
      %60 = dma.vmem_to_hbm [thread:$0]  %s55, 256, %s2, [#allocation5], 128, 128, 8
    $region17: #{tpu_custom_call.1} parent=1 // pred_fallthru
      _
    // Predicated region
    $region18: #{tpu_custom_call.1} parent=1 // pred_check
      _
    $region19: #{tpu_custom_call.1} parent=1 // pred_check_branch
      %62 = sbr.rel (0) target = $region21
    $region20: #{tpu_custom_call.1} parent=1 // pred_region
      %63 = dma.done [#allocation5], 256
    $region21: #{tpu_custom_call.1} parent=1 // pred_fallthru
      _
    %64 = vsyncpa [#allocation4], 1
    %65 = vsyncpa [#allocation5], 1

</llo_original>
